<compile_context>
chip_gen: v6e
topology: v6e:2x2x1
jax: 0.10.0
libtpu: 0.0.40
codegen_flags: <defaults>
</compile_context>

<pallas_src>
import jax
import jax.numpy as jnp
from jax import lax
from jax.experimental import pallas as pl
from jax.experimental.pallas import tpu as pltpu


def _round_up(x, m):
    return (x + m - 1) // m * m


def _lm_head_kernel(inv_t_ref, x_ref, w_ref, b_ref,
                    logits_ref, probs_ref,
                    logit_acc, m_sc, l_sc):
    """Grid (row-tile i, vocab-tile j), vocab axis last ("arbitrary").

    Per (i, j):
      logits tile = x[i] @ w[j]^T + b[j]   (bf16 MXU operands, f32 accumulation)
      - written to the f32 logits output tile (HBM),
      - stored into the resident VMEM row-slab logit_acc[j],
      - online (running max m, running sum-exp l) stats updated.
    At j == last: normalize the whole resident row-slab in VMEM and write the
    probs output block (no HBM re-read of logits).
    """
    j = pl.program_id(1)
    n_vt, _, tv = logit_acc.shape            # static Python ints

    @pl.when(j == 0)
    def _():
        m_sc[...] = jnp.full_like(m_sc, -jnp.inf)
        l_sc[...] = jnp.zeros_like(l_sc)

    # x_ref: [TM, E] bf16, w_ref: [TV, E] bf16 (PyTorch Linear layout, no transpose).
    logits = lax.dot_general(
        x_ref[...], w_ref[...],
        dimension_numbers=(((1,), (1,)), ((), ())),
        preferred_element_type=jnp.float32,
    ) + b_ref[...]                            # [TM, TV] f32

    logits_ref[...] = logits.astype(logits_ref.dtype)   # HBM logits tile
    logit_acc[j] = logits                                # VMEM row-slab copy

    inv_t = inv_t_ref[0]                      # precomputed 1/T (SMEM scalar)
    m_prev = m_sc[...]                        # (TM, 128) lane-dense stats
    m_new = jnp.maximum(m_prev, jnp.max(logits, axis=-1, keepdims=True))
    l_sc[...] = (l_sc[...] * jnp.exp((m_prev - m_new) * inv_t)
                 + jnp.sum(jnp.exp((logits - m_new[:, :1]) * inv_t),
                           axis=-1, keepdims=True))
    m_sc[...] = m_new

    @pl.when(j == pl.num_programs(1) - 1)
    def _():
        m = m_sc[:, :1]
        inv_l = 1.0 / l_sc[:, :1]             # exact divide (approx reciprocal
                                              # broke the probs tolerance)
        for kk in range(n_vt):                # static unroll, all-VMEM, static slices
            probs_ref[:, kk * tv:(kk + 1) * tv] = (
                jnp.exp((logit_acc[kk] - m) * inv_t) * inv_l
            ).astype(probs_ref.dtype)


def prepare_lm_head_params(weight, bias, *, tv_max=512):
    """One-time weight preparation (hoisted out of the per-call wrapper).

    weight: [V, E] (PyTorch nn.Linear layout), bias: [V].
    Returns (w_bf [V_pad, E] bf16, b_pad [1, V_pad] f32, TV, V).
    Padded vocab columns get bias -1e30 so they contribute 0 to the softmax.
    """
    V, _E = weight.shape
    TV = min(tv_max, _round_up(V, 128))       # 512 default -> multiple of 256
    V_pad = _round_up(V, TV)
    w = weight
    b = bias.reshape(1, V).astype(jnp.float32)
    if V_pad > V:
        w = jnp.pad(w, ((0, V_pad - V), (0, 0)))
        b = jnp.pad(b, ((0, 0), (0, V_pad - V)), constant_values=-1e30)
    return w.astype(jnp.bfloat16), b, TV, V


def masked_lm_head(hidden, params, temperature, *,
                   tm_max=512,
                   vmem_limit_bytes=48 * 1024 * 1024,
                   resident_budget_bytes=24 * 1024 * 1024,
                   logits_dtype=jnp.float32,
                   probs_dtype=jnp.float32):
    """hidden: [B, T, E]; params = prepare_lm_head_params(weight, bias).

    Returns (logits [B, T, V], probs [B, T, V]) with
      logits = hidden @ weight.T + bias
      probs  = softmax(logits / temperature, axis=-1)
    """
    w_bf, b_pad, TV, V = params
    B, T, E = hidden.shape
    V_pad = w_bf.shape[0]
    M = B * T

    # ---- row tiling -------------------------------------------------------
    # Multiple of 16 (bf16 sublane packing). Cap so the resident row-slab
    # (f32 logits copy + resident probs output block, ~3x TM*V_pad*4 bytes)
    # stays within budget (v7x has only 64 MiB VMEM per TensorCore).
    tm_cap = max(16, (resident_budget_bytes // (V_pad * 4 * 3)) // 16 * 16)
    TM = min(tm_max, _round_up(M, 16))
    # Prefer >= 2 row tiles so the "parallel" row axis feeds both v7x cores.
    if _round_up(M, TM) // TM < 2 and M > 16:
        TM = _round_up(_round_up(M, 16) // 2, 16)
    TM = max(16, min(TM, tm_cap))
    M_pad = _round_up(M, TM)

    x2d = hidden.reshape(M, E)
    if M_pad > M:
        x2d = jnp.pad(x2d, ((0, M_pad - M), (0, 0)))
    x_bf = x2d.astype(jnp.bfloat16)

    # Precompute 1/T (clamped) once; scalar lives in SMEM.
    inv_t = (1.0 / jnp.maximum(jnp.asarray(temperature, jnp.float32),
                               1e-6)).reshape(1)

    n_mt = M_pad // TM
    n_vt = V_pad // TV
    grid = (n_mt, n_vt)

    logits_p, probs_p = pl.pallas_call(
        _lm_head_kernel,
        grid=grid,
        in_specs=[
            pl.BlockSpec(memory_space=pltpu.MemorySpace.SMEM),    # 1/T scalar
            pl.BlockSpec((TM, E), lambda i, j: (i, 0)),           # x    bf16
            pl.BlockSpec((TV, E), lambda i, j: (j, 0)),           # W    bf16 [V,E]
            pl.BlockSpec((1, TV), lambda i, j: (0, j)),           # bias f32
        ],
        out_specs=(
            pl.BlockSpec((TM, TV), lambda i, j: (i, j)),          # logits tile
            pl.BlockSpec((TM, V_pad), lambda i, j: (i, 0)),       # probs row-slab
        ),
        out_shape=(
            jax.ShapeDtypeStruct((M_pad, V_pad), logits_dtype),
            jax.ShapeDtypeStruct((M_pad, V_pad), probs_dtype),
        ),
        scratch_shapes=[
            pltpu.VMEM((n_vt, TM, TV), jnp.float32),   # resident f32 logits slab
            pltpu.VMEM((TM, 128), jnp.float32),        # running max (lane-dense)
            pltpu.VMEM((TM, 128), jnp.float32),        # running sum-exp
        ],
        compiler_params=pltpu.CompilerParams(
            dimension_semantics=("parallel", "arbitrary"),
            vmem_limit_bytes=vmem_limit_bytes,
        ),
    )(inv_t, x_bf, w_bf, b_pad)

    logits = logits_p[:M, :V].reshape(B, T, V)
    probs = probs_p[:M, :V].reshape(B, T, V)
    return logits, probs


if __name__ == "__main__":
    # Small, deterministic shapes consistent with the module:
    #   vocab_size=128, embed_dim=32, batch=2, seq=8
    vocab_size, embed_dim = 128, 32
    batch, seq = 2, 8

    key = jax.random.PRNGKey(0)
    k_h, k_w, k_b = jax.random.split(key, 3)

    hidden = jax.random.normal(k_h, (batch, seq, embed_dim), dtype=jnp.float32)
    # nn.Linear(embed_dim, vocab_size): weight [V, E], bias [V]
    weight = jax.random.normal(k_w, (vocab_size, embed_dim), dtype=jnp.float32) * 0.05
    bias = jax.random.normal(k_b, (vocab_size,), dtype=jnp.float32) * 0.01
    temperature = 0.8

    # TODO(synk): forward/graded_forward/get_next_probs are `pass` in the source
    # module (and the RNN backbone / CrossEntropyLoss are external); only the
    # out_transform + temperature-softmax head is implemented here.

    params = prepare_lm_head_params(weight, bias)            # one-time pad/cast
    logits, probs = masked_lm_head(hidden, params, temperature)
    jax.block_until_ready((logits, probs))

    # Reference uses the same bf16-quantized operands the kernel feeds the MXU.
    xb = hidden.astype(jnp.bfloat16).astype(jnp.float32)
    wb = weight.astype(jnp.bfloat16).astype(jnp.float32)
    ref_logits = jnp.einsum("bte,ve->btv", xb, wb) + bias
    ref_probs = jax.nn.softmax(ref_logits / temperature, axis=-1)

    assert jnp.allclose(logits, ref_logits, atol=1e-4, rtol=1e-4), "logits mismatch"
    assert jnp.allclose(probs, ref_probs, atol=1e-5, rtol=1e-4), "probs mismatch"
    assert jnp.allclose(jnp.sum(probs, axis=-1), 1.0, atol=1e-5), "probs not normalized"

    print("KERNEL_OK")
</pallas_src>

<mosaic_0001>
module attributes {stable_mosaic.version = 11 : i64} {
  func.func @_lm_head_kernel(%arg0: i32, %arg1: i32, %arg2: memref<1xf32, #tpu.memory_space<smem>>, %arg3: memref<16x32xbf16, #tpu.memory_space<vmem>>, %arg4: memref<128x32xbf16, #tpu.memory_space<vmem>>, %arg5: memref<1x128xf32, #tpu.memory_space<vmem>>, %arg6: memref<16x128xf32, #tpu.memory_space<vmem>>, %arg7: memref<16x128xf32, #tpu.memory_space<vmem>>, %arg8: memref<1x16x128xf32, #tpu.memory_space<vmem>>, %arg9: memref<16x128xf32, #tpu.memory_space<vmem>>, %arg10: memref<16x128xf32, #tpu.memory_space<vmem>>) attributes {dimension_semantics = [#tpu.dimension_semantics<parallel>, #tpu.dimension_semantics<arbitrary>], iteration_bounds = array<i64: 1, 1>, scalar_prefetch = 0 : i64, scratch_operands = 3 : i64, tpu.core_type = #tpu.core_type<tc>, window_params = [{transform_indices = @transform_0, window_bounds = array<i64: 1>}, {transform_indices = @transform_1, window_bounds = array<i64: 16, 32>}, {transform_indices = @transform_2, window_bounds = array<i64: 128, 32>}, {transform_indices = @transform_3, window_bounds = array<i64: 1, 128>}, {transform_indices = @transform_4, window_bounds = array<i64: 16, 128>}, {transform_indices = @transform_5, window_bounds = array<i64: 16, 128>}]} {
    %c0_i32 = arith.constant 0 : i32
    %0 = arith.cmpi eq, %arg1, %c0_i32 : i32
    %1 = arith.extui %0 : i1 to i32
    %c0_i32_0 = arith.constant 0 : i32
    %2 = arith.cmpi ne, %1, %c0_i32_0 : i32
    scf.if %2 {
      %cst_23 = arith.constant 0xFF800000 : f32
      %41 = vector.broadcast %cst_23 : f32 to vector<16x128xf32>
      %c0_24 = arith.constant 0 : index
      %c0_25 = arith.constant 0 : index
      %42 = vector.load %arg9[%c0_24, %c0_25] : memref<16x128xf32, #tpu.memory_space<vmem>>, vector<16x128xf32>
      tpu.vector_store %arg9[%c0_24, %c0_25], %41 {strides = array<i32>} : memref<16x128xf32, #tpu.memory_space<vmem>>, vector<16x128xf32>,
      %cst_26 = arith.constant 0.000000e+00 : f32
      %43 = vector.broadcast %cst_26 : f32 to vector<16x128xf32>
      %c0_27 = arith.constant 0 : index
      %c0_28 = arith.constant 0 : index
      %44 = vector.load %arg10[%c0_27, %c0_28] : memref<16x128xf32, #tpu.memory_space<vmem>>, vector<16x128xf32>
      tpu.vector_store %arg10[%c0_27, %c0_28], %43 {strides = array<i32>} : memref<16x128xf32, #tpu.memory_space<vmem>>, vector<16x128xf32>,
    } else {
    }
    %c0 = arith.constant 0 : index
    %c0_1 = arith.constant 0 : index
    %3 = vector.load %arg3[%c0, %c0_1] : memref<16x32xbf16, #tpu.memory_space<vmem>>, vector<16x32xbf16>
    %c0_2 = arith.constant 0 : index
    %c0_3 = arith.constant 0 : index
    %4 = vector.load %arg4[%c0_2, %c0_3] : memref<128x32xbf16, #tpu.memory_space<vmem>>, vector<128x32xbf16>
    %cst = arith.constant dense<0.000000e+00> : vector<16x128xf32>
    %5 = tpu.matmul %3, %4, %cst {dimension_numbers = #tpu.dot_dimension_numbers<[1], [1], [0], [0], [0, 0, 1, 0], [], []>} : vector<16x32xbf16>, vector<128x32xbf16>, vector<16x128xf32> -> vector<16x128xf32>
    %c0_4 = arith.constant 0 : index
    %c0_5 = arith.constant 0 : index
    %6 = vector.load %arg5[%c0_4, %c0_5] : memref<1x128xf32, #tpu.memory_space<vmem>>, vector<1x128xf32>
    %7 = vector.broadcast %6 : vector<1x128xf32> to vector<16x128xf32>
    %8 = arith.addf %5, %7 : vector<16x128xf32>
    %c0_6 = arith.constant 0 : index
    %c0_7 = arith.constant 0 : index
    %9 = vector.load %arg6[%c0_6, %c0_7] : memref<16x128xf32, #tpu.memory_space<vmem>>, vector<16x128xf32>
    tpu.vector_store %arg6[%c0_6, %c0_7], %8 {strides = array<i32>} : memref<16x128xf32, #tpu.memory_space<vmem>>, vector<16x128xf32>,
    %10 = arith.index_cast %arg1 : i32 to index
    %c0_8 = arith.constant 0 : index
    %c0_9 = arith.constant 0 : index
    %11 = vector.load %arg8[%10, %c0_8, %c0_9] : memref<1x16x128xf32, #tpu.memory_space<vmem>>, vector<1x16x128xf32>
    %12 = vector.shape_cast %11 : vector<1x16x128xf32> to vector<16x128xf32>
    %13 = vector.shape_cast %8 : vector<16x128xf32> to vector<1x16x128xf32>
    tpu.vector_store %arg8[%10, %c0_8, %c0_9], %13 {strides = array<i32>} : memref<1x16x128xf32, #tpu.memory_space<vmem>>, vector<1x16x128xf32>,
    %c0_10 = arith.constant 0 : index
    %14 = memref.load %arg2[%c0_10] : memref<1xf32, #tpu.memory_space<smem>>
    %c0_11 = arith.constant 0 : index
    %c0_12 = arith.constant 0 : index
    %15 = vector.load %arg9[%c0_11, %c0_12] : memref<16x128xf32, #tpu.memory_space<vmem>>, vector<16x128xf32>
    %cst_13 = arith.constant dense<0xFF800000> : vector<16xf32>
    %16 = vector.multi_reduction <maximumf>, %8, %cst_13 [1] : vector<16x128xf32> to vector<16xf32>
    %17 = vector.shape_cast %16 : vector<16xf32> to vector<16x1xf32>
    %18 = vector.broadcast %17 : vector<16x1xf32> to vector<16x128xf32>
    %19 = arith.maximumf %15, %18 : vector<16x128xf32>
    %c0_14 = arith.constant 0 : index
    %c0_15 = arith.constant 0 : index
    %20 = vector.load %arg10[%c0_14, %c0_15] : memref<16x128xf32, #tpu.memory_space<vmem>>, vector<16x128xf32>
    %21 = arith.subf %15, %19 : vector<16x128xf32>
    %22 = vector.broadcast %14 : f32 to vector<16x128xf32>
    %23 = arith.mulf %21, %22 : vector<16x128xf32>
    %24 = math.exp %23 : vector<16x128xf32>
    %25 = arith.mulf %20, %24 : vector<16x128xf32>
    %26 = vector.extract_strided_slice %19 {offsets = [0, 0], sizes = [16, 1], strides = [1, 1]} : vector<16x128xf32> to vector<16x1xf32>
    %27 = vector.broadcast %26 : vector<16x1xf32> to vector<16x128xf32>
    %28 = arith.subf %8, %27 : vector<16x128xf32>
    %29 = vector.broadcast %14 : f32 to vector<16x128xf32>
    %30 = arith.mulf %28, %29 : vector<16x128xf32>
    %31 = math.exp %30 : vector<16x128xf32>
    %cst_16 = arith.constant dense<0.000000e+00> : vector<16xf32>
    %32 = vector.multi_reduction <add>, %31, %cst_16 [1] : vector<16x128xf32> to vector<16xf32>
    %33 = vector.shape_cast %32 : vector<16xf32> to vector<16x1xf32>
    %34 = vector.broadcast %33 : vector<16x1xf32> to vector<16x128xf32>
    %35 = arith.addf %25, %34 : vector<16x128xf32>
    %c0_17 = arith.constant 0 : index
    %c0_18 = arith.constant 0 : index
    %36 = vector.load %arg10[%c0_17, %c0_18] : memref<16x128xf32, #tpu.memory_space<vmem>>, vector<16x128xf32>
    tpu.vector_store %arg10[%c0_17, %c0_18], %35 {strides = array<i32>} : memref<16x128xf32, #tpu.memory_space<vmem>>, vector<16x128xf32>,
    %c0_19 = arith.constant 0 : index
    %c0_20 = arith.constant 0 : index
    %37 = vector.load %arg9[%c0_19, %c0_20] : memref<16x128xf32, #tpu.memory_space<vmem>>, vector<16x128xf32>
    tpu.vector_store %arg9[%c0_19, %c0_20], %19 {strides = array<i32>} : memref<16x128xf32, #tpu.memory_space<vmem>>, vector<16x128xf32>,
    %c0_i32_21 = arith.constant 0 : i32
    %38 = arith.cmpi eq, %arg1, %c0_i32_21 : i32
    %39 = arith.extui %38 : i1 to i32
    %c0_i32_22 = arith.constant 0 : i32
    %40 = arith.cmpi ne, %39, %c0_i32_22 : i32
    scf.if %40 {
      %c0_23 = arith.constant 0 : index
      %c0_24 = arith.constant 0 : index
      %41 = vector.load %arg9[%c0_23, %c0_24] : memref<16x128xf32, #tpu.memory_space<vmem>>, vector<16x1xf32>
      %c0_25 = arith.constant 0 : index
      %c0_26 = arith.constant 0 : index
      %42 = vector.load %arg10[%c0_25, %c0_26] : memref<16x128xf32, #tpu.memory_space<vmem>>, vector<16x1xf32>
      %cst_27 = arith.constant 1.000000e+00 : f32
      %43 = vector.broadcast %cst_27 : f32 to vector<16x1xf32>
      %44 = arith.divf %43, %42 : vector<16x1xf32>
      %c0_28 = arith.constant 0 : index
      %c0_29 = arith.constant 0 : index
      %c0_30 = arith.constant 0 : index
      %45 = vector.load %arg8[%c0_28, %c0_29, %c0_30] : memref<1x16x128xf32, #tpu.memory_space<vmem>>, vector<1x16x128xf32>
      %46 = vector.shape_cast %45 : vector<1x16x128xf32> to vector<16x128xf32>
      %47 = vector.broadcast %41 : vector<16x1xf32> to vector<16x128xf32>
      %48 = arith.subf %46, %47 : vector<16x128xf32>
      %49 = vector.broadcast %14 : f32 to vector<16x128xf32>
      %50 = arith.mulf %48, %49 : vector<16x128xf32>
      %51 = math.exp %50 : vector<16x128xf32>
      %52 = vector.broadcast %44 : vector<16x1xf32> to vector<16x128xf32>
      %53 = arith.mulf %51, %52 : vector<16x128xf32>
      %c0_31 = arith.constant 0 : index
      %c0_32 = arith.constant 0 : index
      %54 = vector.load %arg7[%c0_31, %c0_32] : memref<16x128xf32, #tpu.memory_space<vmem>>, vector<16x128xf32>
      tpu.vector_store %arg7[%c0_31, %c0_32], %53 {strides = array<i32>} : memref<16x128xf32, #tpu.memory_space<vmem>>, vector<16x128xf32>,
    } else {
    }
    return
  }
  func.func @transform_0(%arg0: i32, %arg1: i32) -> i32 {
    %c0_i32 = arith.constant 0 : i32
    %c0_i32_0 = arith.constant 0 : i32
    return %c0_i32 : i32
  }
  func.func @transform_1(%arg0: i32, %arg1: i32) -> (i32, i32) {
    %c0_i32 = arith.constant 0 : i32
    %c0_i32_0 = arith.constant 0 : i32
    return %arg0, %c0_i32 : i32, i32
  }
  func.func @transform_2(%arg0: i32, %arg1: i32) -> (i32, i32) {
    %c0_i32 = arith.constant 0 : i32
    %c0_i32_0 = arith.constant 0 : i32
    return %arg1, %c0_i32 : i32, i32
  }
  func.func @transform_3(%arg0: i32, %arg1: i32) -> (i32, i32) {
    %c0_i32 = arith.constant 0 : i32
    %c0_i32_0 = arith.constant 0 : i32
    return %c0_i32, %arg1 : i32, i32
  }
  func.func @transform_4(%arg0: i32, %arg1: i32) -> (i32, i32) {
    %c0_i32 = arith.constant 0 : i32
    return %arg0, %arg1 : i32, i32
  }
  func.func @transform_5(%arg0: i32, %arg1: i32) -> (i32, i32) {
    %c0_i32 = arith.constant 0 : i32
    %c0_i32_0 = arith.constant 0 : i32
    return %arg0, %c0_i32 : i32, i32
  }
}

</mosaic_0001>

<llo_original>
// kernel: tpu_custom_call.1
$region0: #{tpu_custom_call.1}
  #allocation0 [shape = 'u32[]', space=smem, size = 0x4, offset = 0x4, fixed_abs, tag = 'smem constant byte address 0x4 - core index']
  #allocation1 [shape = 'u32[144,128]{1,0:T(1,128)}', space=vmem, size = 0x12000, scoped, tag = 'internal scratch']
  #allocation2 [shape = 'f32[1,16,128]{2,1,0:T(8,128)}', space=vmem, size = 0x2000, scoped, tag = 'scratch operand']
  #allocation3 [shape = 'f32[16,128]{1,0:T(8,128)}', space=vmem, size = 0x2000, scoped, tag = 'scratch operand']
  #allocation4 [shape = 'f32[16,128]{1,0:T(8,128)}', space=vmem, size = 0x2000, scoped, tag = 'scratch operand']
  #allocation5 [shape = 'f32[1]{0:T(128)S(6)}', space=smem, size = 0x200, scoped, tag = 'scoped memory for tpu_custom_call.1']
  %s0 = inlined_call_operand.<no memory space> [shape: f32[1], index: 0, kind: input, shape index: {}]
  %s1 = inlined_call_operand.vmem [shape: bf16[16,32], index: 1, kind: input, shape index: {}]
  %s2 = inlined_call_operand.vmem [shape: bf16[128,32], index: 2, kind: input, shape index: {}]
  %s3 = inlined_call_operand.vmem [shape: f32[1,128], index: 3, kind: input, shape index: {}]
  %s4 = inlined_call_operand.hbm [shape: f32[16,128], index: 4, kind: output, shape index: {0}]
  %s5 = inlined_call_operand.hbm [shape: f32[16,128], index: 5, kind: output, shape index: {1}]
  %6 = xla_tuple %s4, %s5
  %s7 = sld [smem:[#allocation0]]
  $region42: #{tpu_custom_call.1} parent=0
    _
  %s9 = ssub.s32 1, %s7
  %s10 = scalar_select 0, %s9, %s7
  %11 = sst [smem:[#allocation5]] %s0
  $region1: #{tpu_custom_call.1} parent=0
    #allocation6 [shape = 'u8[8192]{0}', space=vmem, size = 0x2000, scoped, tag = 'output window, operand 0, single buffered']
    #allocation7 [shape = 's32[1]{0}', space=sflag, size = 0x4, scoped, tag = 'scoped memory for tpu_custom_call.1']
    #allocation8 [shape = 'u8[8192]{0}', space=vmem, size = 0x2000, scoped, tag = 'output window, operand 1, single buffered']
    #allocation9 [shape = 's32[1]{0}', space=sflag, size = 0x4, scoped, tag = 'scoped memory for tpu_custom_call.1']
    %12 = vsyncpa [#allocation7], 0
    %13 = vsyncpa [#allocation9], 0
    // Predicated region
    $region2: #{tpu_custom_call.1} parent=1 // pred_check
      _
    $region3: #{tpu_custom_call.1} parent=1 // pred_check_branch
      %15 = sbr.rel (0) target = $region5
    $region4: #{tpu_custom_call.1} parent=1 // pred_region
      _
    $region5: #{tpu_custom_call.1} parent=1 // pred_fallthru
      _
    // Predicated region
    $region6: #{tpu_custom_call.1} parent=1 // pred_check
      _
    $region7: #{tpu_custom_call.1} parent=1 // pred_check_branch
      %17 = sbr.rel (0) target = $region9
    $region8: #{tpu_custom_call.1} parent=1 // pred_region
      _
    $region9: #{tpu_custom_call.1} parent=1 // pred_fallthru
      _
    // Predicated region
    $region10: #{tpu_custom_call.1} parent=1 // pred_check
      _
    $region11: #{tpu_custom_call.1} parent=1 // pred_check_branch
      %19 = sbr.rel (0) target = $region13
    $region12: #{tpu_custom_call.1} parent=1 // pred_region
      _
    $region13: #{tpu_custom_call.1} parent=1 // pred_fallthru
      _
    // Predicated region
    $region14: #{tpu_custom_call.1} parent=1 // pred_check
      _
    $region15: #{tpu_custom_call.1} parent=1 // pred_check_branch
      %21 = sbr.rel (0) target = $region17
    $region16: #{tpu_custom_call.1} parent=1 // pred_region
      _
    $region17: #{tpu_custom_call.1} parent=1 // pred_fallthru
      _
    %p23 = scmp.eq.s32.totalorder 0, 0
    // Predicated region
    $region18: #{tpu_custom_call.1} parent=1 // pred_check
      %p24 = pneg %p23
    $region19: #{tpu_custom_call.1} parent=1 // pred_check_branch
      %26 = sbr.rel (%p24) target = $region21
    $region20: #{tpu_custom_call.1} parent=1 // pred_region
      %27 = vst [vmem:[#allocation3] sm:$0xff] -inf
      %28 = vst [vmem:[#allocation3 + $0x8] sm:$0xff] -inf
      %29 = vst [vmem:[#allocation4] sm:$0xff] 0.0
      %30 = vst [vmem:[#allocation4 + $0x8] sm:$0xff] 0.0
    $region21: #{tpu_custom_call.1} parent=1 // pred_fallthru
      _
    %v31 = vld [vmem:[%s1] sm:$0xf]
    %v32 = vld [vmem:[%s1 + $0x4] sm:$0xf]
    %v33 = vld [vmem:[%s2] sm:$0xf]
    %v34 = vld [vmem:[%s2 + $0x4] sm:$0xf]
    %v35 = vld [vmem:[%s2 + $0x8] sm:$0xf]
    %v36 = vld [vmem:[%s2 + $0xc] sm:$0xf]
    %v37 = vld [vmem:[%s2 + $0x10] sm:$0xf]
    %v38 = vld [vmem:[%s2 + $0x14] sm:$0xf]
    %v39 = vld [vmem:[%s2 + $0x18] sm:$0xf]
    %v40 = vld [vmem:[%s2 + $0x1c] sm:$0xf]
    %v41 = vld [vmem:[%s2 + $0x20] sm:$0xf]
    %v42 = vld [vmem:[%s2 + $0x24] sm:$0xf]
    %v43 = vld [vmem:[%s2 + $0x28] sm:$0xf]
    %v44 = vld [vmem:[%s2 + $0x2c] sm:$0xf]
    %v45 = vld [vmem:[%s2 + $0x30] sm:$0xf]
    %v46 = vld [vmem:[%s2 + $0x34] sm:$0xf]
    %v47 = vld [vmem:[%s2 + $0x38] sm:$0xf]
    %v48 = vld [vmem:[%s2 + $0x3c] sm:$0xf]
    %v49 = vld [vmem:[%s3] sm:$0x1]
    %v51 = vlaneseq
    %v52 = vshrl.u32 %v51, 7
    %v53 = vsub.s32 0, %v52
    %v54 = vrot.slane %v49, %v53
    %v58 = vunpack.c.l.b16 %v31
    %v59 = vunpack.c.l.b16 %v32
    %v60 = vpack.c.b16 %v59, %v58
    %v77 = vunpack.c.l.b16 %v33
    %v78 = vunpack.c.l.b16 %v34
    %v79 = vunpack.c.l.b16 %v35
    %v80 = vunpack.c.l.b16 %v36
    %v81 = vunpack.c.l.b16 %v37
    %v82 = vunpack.c.l.b16 %v38
    %v83 = vunpack.c.l.b16 %v39
    %v84 = vunpack.c.l.b16 %v40
    %v85 = vunpack.c.l.b16 %v41
    %v86 = vunpack.c.l.b16 %v42
    %v87 = vunpack.c.l.b16 %v43
    %v88 = vunpack.c.l.b16 %v44
    %v89 = vunpack.c.l.b16 %v45
    %v90 = vunpack.c.l.b16 %v46
    %v91 = vunpack.c.l.b16 %v47
    %v92 = vunpack.c.l.b16 %v48
    %v93 = vpack.c.b16 %v78, %v77
    %v94 = vpack.c.b16 %v80, %v79
    %v95 = vpack.c.b16 %v82, %v81
    %v96 = vpack.c.b16 %v84, %v83
    %v97 = vpack.c.b16 %v86, %v85
    %v98 = vpack.c.b16 %v88, %v87
    %v99 = vpack.c.b16 %v90, %v89
    %v100 = vpack.c.b16 %v92, %v91
    %vm101 = vcmask 261120
    %v103 = vsel %vm101, %v60, 0
    %v106 = vsel %vm101, %v93, 0
    %v109 = vsel %vm101, %v94, 0
    %v112 = vsel %vm101, %v95, 0
    %v115 = vsel %vm101, %v96, 0
    %v118 = vsel %vm101, %v97, 0
    %v121 = vsel %vm101, %v98, 0
    %v124 = vsel %vm101, %v99, 0
    %v127 = vsel %vm101, %v100, 0
    %129 = vmatprep.subr.bf16.mxu0 0
    %130 = vmatpush1.bf16.xpose.msra.mxu0 %v127
    %131 = vmatprep.subr.bf16.mxu0 0
    %132 = vmatpush1.bf16.xpose.msra.mxu0 %v124
    %133 = vmatprep.subr.bf16.mxu0 0
    %134 = vmatpush1.bf16.xpose.msra.mxu0 %v121
    %135 = vmatprep.subr.bf16.mxu0 0
    %136 = vmatpush1.bf16.xpose.msra.mxu0 %v118
    %137 = vmatprep.subr.bf16.mxu0 0
    %138 = vmatpush1.bf16.xpose.msra.mxu0 %v115
    %139 = vmatprep.subr.bf16.mxu0 0
    %140 = vmatpush1.bf16.xpose.msra.mxu0 %v112
    %141 = vmatprep.subr.bf16.mxu0 0
    %142 = vmatpush1.bf16.xpose.msra.mxu0 %v109
    %143 = vmatprep.subr.bf16.mxu0 0
    %144 = vmatpush1.bf16.xpose.msra.mxu0 %v106
    %145 = vmatprep.subr.bf16.mxu0 0
    %146 = vmatpush2.bf16.xpose.msra.mxu0 0
    %147 = vmatprep.subr.bf16.mxu0 0
    %148 = vmatpush2.bf16.xpose.msra.mxu0 0
    %149 = vmatprep.subr.bf16.mxu0 0
    %150 = vmatpush2.bf16.xpose.msra.mxu0 0
    %151 = vmatprep.subr.bf16.mxu0 0
    %152 = vmatpush2.bf16.xpose.msra.mxu0 0
    %153 = vmatprep.subr.bf16.mxu0 0
    %154 = vmatpush2.bf16.xpose.msra.mxu0 0
    %155 = vmatprep.subr.bf16.mxu0 0
    %156 = vmatpush2.bf16.xpose.msra.mxu0 0
    %157 = vmatprep.subr.bf16.mxu0 0
    %158 = vmatpush2.bf16.xpose.msra.mxu0 0
    %159 = vmatprep.subr.bf16.mxu0 0
    %160 = vmatpush2.bf16.xpose.msra.mxu0 0
    %161 = vmatprep.mubr.bf16.mxu0 0
    %162 = vmatmul.mubr.bf16.gmra.mxu0 %v103
    %v163 = vpop.f32.mrf.mxu0
    %v164 = vadd.f32 %v54, %v163
    %v165 = vpop.f32.mrf.mxu0
    %v166 = vpop.f32.mrf.mxu0
    %v167 = vadd.f32 %v54, %v166
    %v168 = vpop.f32.mrf.mxu0
    %169 = vdwg.mxu0
    %170 = vst [vmem:[#allocation6] sm:$0xff] %v164
    %171 = vst [vmem:[#allocation6 + $0x8] sm:$0xff] %v167
    %s172 = smul.u32 0, 16
    %s173 = scalar_lea.vmem [#allocation2], %s172
    %174 = vst [vmem:[%s173] sm:$0xff] %v164
    %175 = vst [vmem:[%s173 + $0x8] sm:$0xff] %v167
    %s176 = sld [smem:[#allocation5]]
    %v177 = vld [vmem:[#allocation3] sm:$0xff]
    %v178 = vld [vmem:[#allocation3 + $0x8] sm:$0xff]
    %179 = vmax.xlane.f32.xlu0 %v164
    %v180 = vpop.xlane.xlu0 %179
    %181 = vmax.xlane.f32.xlu0 %v167
    %v182 = vpop.xlane.xlu0 %181
    %v183 = vmax.f32 %v177, %v180
    %v184 = vmax.f32 %v178, %v182
    %v185 = vld [vmem:[#allocation4] sm:$0xff]
    %v186 = vld [vmem:[#allocation4 + $0x8] sm:$0xff]
    %v187 = vsub.f32 %v177, %v183
    %v188 = vsub.f32 %v178, %v184
    %v189 = vstv %s176
    %v190 = vmul.f32 %v187, %v189
    %v191 = vmul.f32 %v188, %v189
    %v192 = vmul.f32 %v190, 1.442695
    %v193 = vpow.pop %v192
    %v194 = vmul.f32 %v191, 1.442695
    %v195 = vpow.pop %v194
    %v196 = vmul.f32 %v185, %v193
    %v197 = vmul.f32 %v186, %v195
    %199 = vset.pattern.permute.xlu0 0
    %200 = vperm.xlu0 %199, %v183
    %v201 = vpop.permute.xlu0 %200
    %204 = vset.pattern.permute.xlu0 0
    %205 = vperm.xlu0 %204, %v184
    %v206 = vpop.permute.xlu0 %205
    %v208 = vsub.f32 %v164, %v201
    %v209 = vsub.f32 %v167, %v206
    %v210 = vmul.f32 %v208, %v189
    %v211 = vmul.f32 %v209, %v189
    %v212 = vmul.f32 %v210, 1.442695
    %v213 = vpow.pop %v212
    %v214 = vmul.f32 %v211, 1.442695
    %v215 = vpow.pop %v214
    %216 = vadd.xlane.f32.xlu0 %v213
    %v217 = vpop.xlane.xlu0 %216
    %218 = vadd.xlane.f32.xlu0 %v215
    %v219 = vpop.xlane.xlu0 %218
    %v220 = vadd.f32 %v196, %v217
    %v221 = vadd.f32 %v197, %v219
    %222 = vst [vmem:[#allocation4] sm:$0xff] %v220
    %223 = vst [vmem:[#allocation4 + $0x8] sm:$0xff] %v221
    %224 = vst [vmem:[#allocation3] sm:$0xff] %v183
    %225 = vst [vmem:[#allocation3 + $0x8] sm:$0xff] %v184
    // Predicated region
    $region22: #{tpu_custom_call.1} parent=1 // pred_check
      %p226 = pneg %p23
    $region23: #{tpu_custom_call.1} parent=1 // pred_check_branch
      %228 = sbr.rel (%p226) target = $region25
    $region24: #{tpu_custom_call.1} parent=1 // pred_region
      %v229 = vld [vmem:[#allocation3] sm:$0xff]
      %v230 = vld [vmem:[#allocation3 + $0x8] sm:$0xff]
      %v231 = vld [vmem:[#allocation4] sm:$0xff]
      %v232 = vld [vmem:[#allocation4 + $0x8] sm:$0xff]
      %v233 = vrcp.pop %v231
      %v234 = vmul.f32 1.0, %v233
      %v235 = vrcp.pop %v232
      %v236 = vmul.f32 1.0, %v235
      %v237 = vld [vmem:[#allocation2] sm:$0xff]
      %v238 = vld [vmem:[#allocation2 + $0x8] sm:$0xff]
      %240 = vset.pattern.permute.xlu0 0
      %241 = vperm.xlu0 %240, %v229
      %v242 = vpop.permute.xlu0 %241
      %245 = vset.pattern.permute.xlu0 0
      %246 = vperm.xlu0 %245, %v230
      %v247 = vpop.permute.xlu0 %246
      %v249 = vsub.f32 %v237, %v242
      %v250 = vsub.f32 %v238, %v247
      %v251 = vmul.f32 %v249, %v189
      %v252 = vmul.f32 %v250, %v189
      %v253 = vmul.f32 %v251, 1.442695
      %v254 = vpow.pop %v253
      %v255 = vmul.f32 %v252, 1.442695
      %v256 = vpow.pop %v255
      %258 = vset.pattern.permute.xlu0 0
      %259 = vperm.xlu0 %258, %v234
      %v260 = vpop.permute.xlu0 %259
      %263 = vset.pattern.permute.xlu0 0
      %264 = vperm.xlu0 %263, %v236
      %v265 = vpop.permute.xlu0 %264
      %v267 = vmul.f32 %v254, %v260
      %v268 = vmul.f32 %v256, %v265
      %269 = vst [vmem:[#allocation8] sm:$0xff] %v267
      %270 = vst [vmem:[#allocation8 + $0x8] sm:$0xff] %v268
    $region25: #{tpu_custom_call.1} parent=1 // pred_fallthru
      _
    // Predicated region
    $region26: #{tpu_custom_call.1} parent=1 // pred_check
      _
    $region27: #{tpu_custom_call.1} parent=1 // pred_check_branch
      %272 = sbr.rel (0) target = $region29
    $region28: #{tpu_custom_call.1} parent=1 // pred_region
      %s274 = ssub.s32 256, 256
      %275 = vsyncadd [#allocation7], %s274
      %s276 = sshll.u32 [#allocation6], 4
      %s277 = int_to_ptr.vmem [resolvable:$true] %s276
      %282 = dma.vmem_to_hbm [thread:$0]  %s277, 256, %s4, [#allocation7], 128, 128, 8
    $region29: #{tpu_custom_call.1} parent=1 // pred_fallthru
      _
    // Predicated region
    $region30: #{tpu_custom_call.1} parent=1 // pred_check
      _
    $region31: #{tpu_custom_call.1} parent=1 // pred_check_branch
      %284 = sbr.rel (0) target = $region33
    $region32: #{tpu_custom_call.1} parent=1 // pred_region
      %s286 = ssub.s32 256, 256
      %287 = vsyncadd [#allocation9], %s286
      %s288 = sshll.u32 [#allocation8], 4
      %s289 = int_to_ptr.vmem [resolvable:$true] %s288
      %294 = dma.vmem_to_hbm [thread:$0]  %s289, 256, %s5, [#allocation9], 128, 128, 8
    $region33: #{tpu_custom_call.1} parent=1 // pred_fallthru
      _
    // Predicated region
    $region34: #{tpu_custom_call.1} parent=1 // pred_check
      _
    $region35: #{tpu_custom_call.1} parent=1 // pred_check_branch
      %296 = sbr.rel (0) target = $region37
    $region36: #{tpu_custom_call.1} parent=1 // pred_region
      %297 = dma.done [#allocation7], 256
    $region37: #{tpu_custom_call.1} parent=1 // pred_fallthru
      _
    // Predicated region
    $region38: #{tpu_custom_call.1} parent=1 // pred_check
      _
    $region39: #{tpu_custom_call.1} parent=1 // pred_check_branch
      %299 = sbr.rel (0) target = $region41
    $region40: #{tpu_custom_call.1} parent=1 // pred_region
      %300 = dma.done [#allocation9], 256
    $region41: #{tpu_custom_call.1} parent=1 // pred_fallthru
      _
    %301 = vsyncpa [#allocation7], 1
    %302 = vsyncpa [#allocation9], 1

</llo_original>
